<compile_context>
chip_gen: v5e
topology: v5e:2x2
jax: 0.10.0
libtpu: 0.0.40
codegen_flags: <defaults>
</compile_context>

<pallas_src>
import functools
import math

import jax
import jax.numpy as jnp
from jax.experimental import pallas as pl
from jax.experimental.pallas import tpu as pltpu

_LANE = 128       # feature dims padded to a multiple of the lane width
_SUBLANE = 16     # batch tiles padded to 16 sublanes (bf16 min tile is (16,128))


def _round_up(v, m):
    return ((v + m - 1) // m) * m


def _fused_mlp_kernel(x_ref, *refs, num_layers):
    """Entire discriminator MLP for one batch tile.

    refs = (w0, b0, w1, b1, ..., w_{L-1}, b_{L-1}, o_ref). Weights are bf16 and
    lane-dense (padded to 128); biases are f32; intermediates stay in f32 and
    are cast to bf16 only right before each MXU matmul.
    """
    o_ref = refs[-1]
    wb = refs[:-1]
    h = x_ref[...]                                     # bf16 input tile
    for i in range(num_layers):
        w = wb[2 * i][...]                             # bf16 (in_p, out_p)
        b = wb[2 * i + 1][...]                         # f32  (1, out_p) -> sublane bcast
        # bf16 x bf16 operands, f32 accumulation on the MXU; f32 bias add.
        acc = jnp.dot(h.astype(jnp.bfloat16), w,
                      preferred_element_type=jnp.float32) + b
        if i < num_layers - 1:
            # LeakyReLU(0.01): one vmul + one vmax (no compare/select).
            h = jnp.maximum(acc, 0.01 * acc)
        else:
            # Sigmoid: exp on the EUP, approx reciprocal on the EUP vrcp path.
            h = pl.reciprocal(1.0 + jnp.exp(-acc), approx=True)
    o_ref[...] = h.astype(o_ref.dtype)


def init_discriminator_params(key, input_dim, layers):
    """Deterministic init matching nn.Linear's default U(-1/sqrt(in), 1/sqrt(in)).

    Weights stored as [in, out] so the kernel computes y = x @ W + b directly.
    """
    params = []
    last = input_dim
    for width in layers:
        key, kw, kb = jax.random.split(key, 3)
        bound = 1.0 / math.sqrt(last)
        w = jax.random.uniform(kw, (last, width), jnp.float32, -bound, bound)
        b = jax.random.uniform(kb, (width,), jnp.float32, -bound, bound)
        params.append((w, b))
        last = width
    return params


def pad_discriminator_params(params, input_dim):
    """Zero-pad weights/biases to lane-dense (multiple-of-128) shapes.

    Weights are cast to bf16 once here (MXU-native on v5e/v6e/v7x); biases stay
    f32 for the f32 accumulator add. Done once, outside the hot path.
    Returns (flat padded list, padded input dim, list of true output widths).
    """
    din_p = _round_up(input_dim, _LANE)
    padded = []
    widths = []
    last_p = din_p
    for w, b in params:
        d_in, d_out = w.shape
        d_out_p = _round_up(d_out, _LANE)
        wp = (jnp.zeros((last_p, d_out_p), jnp.float32)
              .at[:d_in, :d_out].set(w.astype(jnp.float32))
              .astype(jnp.bfloat16))
        bp = jnp.zeros((1, d_out_p), jnp.float32).at[0, :d_out].set(b.astype(jnp.float32))
        padded.extend([wp, bp])
        widths.append(d_out)
        last_p = d_out_p
    return padded, din_p, widths


def _choose_batch_tile(B, batch_tile):
    """Pick a 16-sublane-aligned batch tile; ensure >= 2 grid steps when possible."""
    bt = _round_up(min(batch_tile, max(B, _SUBLANE)), _SUBLANE)
    if B > _SUBLANE:
        # Cap so the grid has at least 2 steps: v7x has 2 TensorCores and the
        # "parallel" batch axis can only be sharded when the grid length >= 2.
        half = _round_up(-(-B // 2), _SUBLANE)
        bt = min(bt, half)
    return max(bt, _SUBLANE)


def _discriminator_apply(padded_params, din_p, widths, x, *, batch_tile=1024):
    """Run the fused MLP kernel on x: [B, Din] -> [B, widths[-1]]."""
    B, din = x.shape
    num_layers = len(widths)
    out_dim = widths[-1]
    out_p = _round_up(out_dim, _LANE)
    out_dtype = x.dtype

    bt = _choose_batch_tile(B, batch_tile)
    Bp = _round_up(B, bt)

    # Pad + cast the input to a lane-dense bf16 slab in one copy (halves the
    # x DMA bytes; padded lanes/rows are exactly zero).
    xp = (jnp.zeros((Bp, din_p), jnp.float32)
          .at[:B, :din].set(x.astype(jnp.float32))
          .astype(jnp.bfloat16))

    def build_in_specs(single_buffer_weights):
        wkw = {"pipeline_mode": pl.Buffered(1)} if single_buffer_weights else {}
        specs = [pl.BlockSpec((bt, din_p), lambda i: (i, 0))]
        last_p = din_p
        for d_out in widths:
            d_out_p = _round_up(d_out, _LANE)
            # Constant index maps -> weight/bias blocks are fetched once and
            # stay resident in VMEM across the batch grid; single-buffer them
            # (no re-DMA ever happens, the 2nd buffer is wasted VMEM).
            specs.append(pl.BlockSpec((last_p, d_out_p), lambda i: (0, 0), **wkw))
            specs.append(pl.BlockSpec((1, d_out_p), lambda i: (0, 0), **wkw))
            last_p = d_out_p
        return specs

    def run(single_buffer_weights):
        return pl.pallas_call(
            functools.partial(_fused_mlp_kernel, num_layers=num_layers),
            out_shape=jax.ShapeDtypeStruct((Bp, out_p), out_dtype),
            grid=(Bp // bt,),
            in_specs=build_in_specs(single_buffer_weights),
            out_specs=pl.BlockSpec((bt, out_p), lambda i: (i, 0)),
            compiler_params=pltpu.CompilerParams(
                dimension_semantics=("parallel",),
                vmem_limit_bytes=32 * 1024 * 1024,
            ),
        )(xp, *padded_params)

    try:
        out = run(True)
    except Exception:
        # Fallback if Buffered(1) is rejected by this Pallas version:
        # identical math, just default double-buffered resident weights.
        out = run(False)

    # TODO(synk): if the (Bp, 128) final writeback ever shows in the trace,
    # pack the scalar output so batch maps to lanes instead of slicing here.
    return out[:B, :out_dim]


def discriminator_forward(params, x, *, batch_tile=1024):
    """Convenience wrapper: pad params + run the fused kernel."""
    padded, din_p, widths = pad_discriminator_params(params, x.shape[1])
    return _discriminator_apply(padded, din_p, widths, x, batch_tile=batch_tile)


def discriminator_reference(params, x):
    """Pure-JAX f32 reference for correctness checking."""
    n = len(params)
    h = x
    for i, (w, b) in enumerate(params):
        h = h @ w + b
        if i == n - 1:
            h = jax.nn.sigmoid(h)
        else:
            h = jnp.where(h >= 0.0, h, 0.01 * h)
    return h


if __name__ == "__main__":
    key = jax.random.PRNGKey(0)
    key, kx, kx2, kp = jax.random.split(key, 4)

    input_dim = 32
    layers = [32, 16, 1]   # hidden widths + final output width (confidence)
    params = init_discriminator_params(kp, input_dim, layers)

    # Pad/cast parameters once (lane-dense bf16 weights, f32 biases).
    padded, din_p, widths = pad_discriminator_params(params, input_dim)

    # Case 1: tiny batch (single grid step).
    x1 = jax.random.normal(kx, (8, input_dim), jnp.float32)
    # Case 2: batch that exercises row padding and a >=2-step parallel grid.
    x2 = jax.random.normal(kx2, (40, input_dim), jnp.float32)

    for x in (x1, x2):
        out = _discriminator_apply(padded, din_p, widths, x)
        out = jax.block_until_ready(out)
        ref = discriminator_reference(params, x)

        assert out.shape == (x.shape[0], layers[-1])
        # bf16 operands + approx reciprocal: allow a small slack on the bounds
        # and a relaxed tolerance vs. the f32 reference.
        assert bool(jnp.all((out >= -1e-3) & (out <= 1.0 + 1e-3)))
        assert jnp.allclose(out, ref, atol=3e-2, rtol=3e-2), float(
            jnp.max(jnp.abs(out - ref)))

    print("KERNEL_OK")
</pallas_src>

<mosaic_0001>
module attributes {stable_mosaic.version = 11 : i64} {
  func.func @_fused_mlp_kernel(%arg0: i32, %arg1: memref<16x128xbf16, #tpu.memory_space<vmem>>, %arg2: memref<128x128xbf16, #tpu.memory_space<vmem>>, %arg3: memref<1x128xf32, #tpu.memory_space<vmem>>, %arg4: memref<128x128xbf16, #tpu.memory_space<vmem>>, %arg5: memref<1x128xf32, #tpu.memory_space<vmem>>, %arg6: memref<128x128xbf16, #tpu.memory_space<vmem>>, %arg7: memref<1x128xf32, #tpu.memory_space<vmem>>, %arg8: memref<16x128xf32, #tpu.memory_space<vmem>>) attributes {dimension_semantics = [#tpu.dimension_semantics<parallel>], iteration_bounds = array<i64: 1>, scalar_prefetch = 0 : i64, scratch_operands = 0 : i64, tpu.core_type = #tpu.core_type<tc>, window_params = [{transform_indices = @transform_0, window_bounds = array<i64: 16, 128>}, {pipeline_mode = #tpu.pipeline_mode<synchronous>, transform_indices = @transform_1, window_bounds = array<i64: 128, 128>}, {pipeline_mode = #tpu.pipeline_mode<synchronous>, transform_indices = @transform_2, window_bounds = array<i64: 1, 128>}, {pipeline_mode = #tpu.pipeline_mode<synchronous>, transform_indices = @transform_3, window_bounds = array<i64: 128, 128>}, {pipeline_mode = #tpu.pipeline_mode<synchronous>, transform_indices = @transform_4, window_bounds = array<i64: 1, 128>}, {pipeline_mode = #tpu.pipeline_mode<synchronous>, transform_indices = @transform_5, window_bounds = array<i64: 128, 128>}, {pipeline_mode = #tpu.pipeline_mode<synchronous>, transform_indices = @transform_6, window_bounds = array<i64: 1, 128>}, {transform_indices = @transform_7, window_bounds = array<i64: 16, 128>}]} {
    %c0 = arith.constant 0 : index
    %c0_0 = arith.constant 0 : index
    %0 = vector.load %arg1[%c0, %c0_0] : memref<16x128xbf16, #tpu.memory_space<vmem>>, vector<16x128xbf16>
    %c0_1 = arith.constant 0 : index
    %c0_2 = arith.constant 0 : index
    %1 = vector.load %arg2[%c0_1, %c0_2] : memref<128x128xbf16, #tpu.memory_space<vmem>>, vector<128x128xbf16>
    %c0_3 = arith.constant 0 : index
    %c0_4 = arith.constant 0 : index
    %2 = vector.load %arg3[%c0_3, %c0_4] : memref<1x128xf32, #tpu.memory_space<vmem>>, vector<1x128xf32>
    %cst = arith.constant dense<0.000000e+00> : vector<16x128xf32>
    %3 = tpu.matmul %0, %1, %cst {dimension_numbers = #tpu.dot_dimension_numbers<[1], [0], [0], [1], [0, 0, 1, 1], [], []>} : vector<16x128xbf16>, vector<128x128xbf16>, vector<16x128xf32> -> vector<16x128xf32>
    %4 = vector.broadcast %2 : vector<1x128xf32> to vector<16x128xf32>
    %5 = arith.addf %3, %4 : vector<16x128xf32>
    %cst_5 = arith.constant 0.00999999977 : f32
    %6 = vector.broadcast %cst_5 : f32 to vector<16x128xf32>
    %7 = arith.mulf %6, %5 : vector<16x128xf32>
    %8 = arith.maximumf %5, %7 : vector<16x128xf32>
    %c0_6 = arith.constant 0 : index
    %c0_7 = arith.constant 0 : index
    %9 = vector.load %arg4[%c0_6, %c0_7] : memref<128x128xbf16, #tpu.memory_space<vmem>>, vector<128x128xbf16>
    %c0_8 = arith.constant 0 : index
    %c0_9 = arith.constant 0 : index
    %10 = vector.load %arg5[%c0_8, %c0_9] : memref<1x128xf32, #tpu.memory_space<vmem>>, vector<1x128xf32>
    %11 = arith.truncf %8 : vector<16x128xf32> to vector<16x128xbf16>
    %cst_10 = arith.constant dense<0.000000e+00> : vector<16x128xf32>
    %12 = tpu.matmul %11, %9, %cst_10 {dimension_numbers = #tpu.dot_dimension_numbers<[1], [0], [0], [1], [0, 0, 1, 1], [], []>} : vector<16x128xbf16>, vector<128x128xbf16>, vector<16x128xf32> -> vector<16x128xf32>
    %13 = vector.broadcast %10 : vector<1x128xf32> to vector<16x128xf32>
    %14 = arith.addf %12, %13 : vector<16x128xf32>
    %cst_11 = arith.constant 0.00999999977 : f32
    %15 = vector.broadcast %cst_11 : f32 to vector<16x128xf32>
    %16 = arith.mulf %15, %14 : vector<16x128xf32>
    %17 = arith.maximumf %14, %16 : vector<16x128xf32>
    %c0_12 = arith.constant 0 : index
    %c0_13 = arith.constant 0 : index
    %18 = vector.load %arg6[%c0_12, %c0_13] : memref<128x128xbf16, #tpu.memory_space<vmem>>, vector<128x128xbf16>
    %c0_14 = arith.constant 0 : index
    %c0_15 = arith.constant 0 : index
    %19 = vector.load %arg7[%c0_14, %c0_15] : memref<1x128xf32, #tpu.memory_space<vmem>>, vector<1x128xf32>
    %20 = arith.truncf %17 : vector<16x128xf32> to vector<16x128xbf16>
    %cst_16 = arith.constant dense<0.000000e+00> : vector<16x128xf32>
    %21 = tpu.matmul %20, %18, %cst_16 {dimension_numbers = #tpu.dot_dimension_numbers<[1], [0], [0], [1], [0, 0, 1, 1], [], []>} : vector<16x128xbf16>, vector<128x128xbf16>, vector<16x128xf32> -> vector<16x128xf32>
    %22 = vector.broadcast %19 : vector<1x128xf32> to vector<16x128xf32>
    %23 = arith.addf %21, %22 : vector<16x128xf32>
    %cst_17 = arith.constant 0.000000e+00 : f32
    %24 = vector.broadcast %cst_17 : f32 to vector<16x128xf32>
    %25 = arith.subf %24, %23 : vector<16x128xf32>
    %26 = math.exp %25 : vector<16x128xf32>
    %cst_18 = arith.constant 1.000000e+00 : f32
    %27 = vector.broadcast %cst_18 : f32 to vector<16x128xf32>
    %28 = arith.addf %27, %26 : vector<16x128xf32>
    %29 = tpu.reciprocal %28 {approx = true} : vector<16x128xf32> -> vector<16x128xf32>
    %c0_19 = arith.constant 0 : index
    %c0_20 = arith.constant 0 : index
    %30 = vector.load %arg8[%c0_19, %c0_20] : memref<16x128xf32, #tpu.memory_space<vmem>>, vector<16x128xf32>
    tpu.vector_store %arg8[%c0_19, %c0_20], %29 {strides = array<i32>} : memref<16x128xf32, #tpu.memory_space<vmem>>, vector<16x128xf32>,
    return
  }
  func.func @transform_0(%arg0: i32) -> (i32, i32) {
    %c0_i32 = arith.constant 0 : i32
    %c0_i32_0 = arith.constant 0 : i32
    return %arg0, %c0_i32 : i32, i32
  }
  func.func @transform_1(%arg0: i32) -> (i32, i32) {
    %c0_i32 = arith.constant 0 : i32
    %c0_i32_0 = arith.constant 0 : i32
    %c0_i32_1 = arith.constant 0 : i32
    return %c0_i32, %c0_i32_0 : i32, i32
  }
  func.func @transform_2(%arg0: i32) -> (i32, i32) {
    %c0_i32 = arith.constant 0 : i32
    %c0_i32_0 = arith.constant 0 : i32
    %c0_i32_1 = arith.constant 0 : i32
    return %c0_i32, %c0_i32_0 : i32, i32
  }
  func.func @transform_3(%arg0: i32) -> (i32, i32) {
    %c0_i32 = arith.constant 0 : i32
    %c0_i32_0 = arith.constant 0 : i32
    %c0_i32_1 = arith.constant 0 : i32
    return %c0_i32, %c0_i32_0 : i32, i32
  }
  func.func @transform_4(%arg0: i32) -> (i32, i32) {
    %c0_i32 = arith.constant 0 : i32
    %c0_i32_0 = arith.constant 0 : i32
    %c0_i32_1 = arith.constant 0 : i32
    return %c0_i32, %c0_i32_0 : i32, i32
  }
  func.func @transform_5(%arg0: i32) -> (i32, i32) {
    %c0_i32 = arith.constant 0 : i32
    %c0_i32_0 = arith.constant 0 : i32
    %c0_i32_1 = arith.constant 0 : i32
    return %c0_i32, %c0_i32_0 : i32, i32
  }
  func.func @transform_6(%arg0: i32) -> (i32, i32) {
    %c0_i32 = arith.constant 0 : i32
    %c0_i32_0 = arith.constant 0 : i32
    %c0_i32_1 = arith.constant 0 : i32
    return %c0_i32, %c0_i32_0 : i32, i32
  }
  func.func @transform_7(%arg0: i32) -> (i32, i32) {
    %c0_i32 = arith.constant 0 : i32
    %c0_i32_0 = arith.constant 0 : i32
    return %arg0, %c0_i32 : i32, i32
  }
}

module attributes {stable_mosaic.version = 11 : i64} {
  func.func @_fused_mlp_kernel(%arg0: i32, %arg1: memref<16x128xbf16, #tpu.memory_space<vmem>>, %arg2: memref<128x128xbf16, #tpu.memory_space<vmem>>, %arg3: memref<1x128xf32, #tpu.memory_space<vmem>>, %arg4: memref<128x128xbf16, #tpu.memory_space<vmem>>, %arg5: memref<1x128xf32, #tpu.memory_space<vmem>>, %arg6: memref<128x128xbf16, #tpu.memory_space<vmem>>, %arg7: memref<1x128xf32, #tpu.memory_space<vmem>>, %arg8: memref<16x128xf32, #tpu.memory_space<vmem>>) attributes {dimension_semantics = [#tpu.dimension_semantics<parallel>], iteration_bounds = array<i64: 1>, scalar_prefetch = 0 : i64, scratch_operands = 0 : i64, tpu.core_type = #tpu.core_type<tc>, window_params = [{transform_indices = @transform_0, window_bounds = array<i64: 16, 128>}, {pipeline_mode = #tpu.pipeline_mode<synchronous>, transform_indices = @transform_1, window_bounds = array<i64: 128, 128>}, {pipeline_mode = #tpu.pipeline_mode<synchronous>, transform_indices = @transform_2, window_bounds = array<i64: 1, 128>}, {pipeline_mode = #tpu.pipeline_mode<synchronous>, transform_indices = @transform_3, window_bounds = array<i64: 128, 128>}, {pipeline_mode = #tpu.pipeline_mode<synchronous>, transform_indices = @transform_4, window_bounds = array<i64: 1, 128>}, {pipeline_mode = #tpu.pipeline_mode<synchronous>, transform_indices = @transform_5, window_bounds = array<i64: 128, 128>}, {pipeline_mode = #tpu.pipeline_mode<synchronous>, transform_indices = @transform_6, window_bounds = array<i64: 1, 128>}, {transform_indices = @transform_7, window_bounds = array<i64: 16, 128>}]} {
    %c0 = arith.constant 0 : index
    %c0_0 = arith.constant 0 : index
    %0 = vector.load %arg1[%c0, %c0_0] : memref<16x128xbf16, #tpu.memory_space<vmem>>, vector<16x128xbf16>
    %c0_1 = arith.constant 0 : index
    %c0_2 = arith.constant 0 : index
    %1 = vector.load %arg2[%c0_1, %c0_2] : memref<128x128xbf16, #tpu.memory_space<vmem>>, vector<128x128xbf16>
    %c0_3 = arith.constant 0 : index
    %c0_4 = arith.constant 0 : index
    %2 = vector.load %arg3[%c0_3, %c0_4] : memref<1x128xf32, #tpu.memory_space<vmem>>, vector<1x128xf32>
    %cst = arith.constant dense<0.000000e+00> : vector<16x128xf32>
    %3 = tpu.matmul %0, %1, %cst {dimension_numbers = #tpu.dot_dimension_numbers<[1], [0], [0], [1], [0, 0, 1, 1], [], []>} : vector<16x128xbf16>, vector<128x128xbf16>, vector<16x128xf32> -> vector<16x128xf32>
    %4 = vector.broadcast %2 : vector<1x128xf32> to vector<16x128xf32>
    %5 = arith.addf %3, %4 : vector<16x128xf32>
    %cst_5 = arith.constant 0.00999999977 : f32
    %6 = vector.broadcast %cst_5 : f32 to vector<16x128xf32>
    %7 = arith.mulf %6, %5 : vector<16x128xf32>
    %8 = arith.maximumf %5, %7 : vector<16x128xf32>
    %c0_6 = arith.constant 0 : index
    %c0_7 = arith.constant 0 : index
    %9 = vector.load %arg4[%c0_6, %c0_7] : memref<128x128xbf16, #tpu.memory_space<vmem>>, vector<128x128xbf16>
    %c0_8 = arith.constant 0 : index
    %c0_9 = arith.constant 0 : index
    %10 = vector.load %arg5[%c0_8, %c0_9] : memref<1x128xf32, #tpu.memory_space<vmem>>, vector<1x128xf32>
    %11 = arith.truncf %8 : vector<16x128xf32> to vector<16x128xbf16>
    %cst_10 = arith.constant dense<0.000000e+00> : vector<16x128xf32>
    %12 = tpu.matmul %11, %9, %cst_10 {dimension_numbers = #tpu.dot_dimension_numbers<[1], [0], [0], [1], [0, 0, 1, 1], [], []>} : vector<16x128xbf16>, vector<128x128xbf16>, vector<16x128xf32> -> vector<16x128xf32>
    %13 = vector.broadcast %10 : vector<1x128xf32> to vector<16x128xf32>
    %14 = arith.addf %12, %13 : vector<16x128xf32>
    %cst_11 = arith.constant 0.00999999977 : f32
    %15 = vector.broadcast %cst_11 : f32 to vector<16x128xf32>
    %16 = arith.mulf %15, %14 : vector<16x128xf32>
    %17 = arith.maximumf %14, %16 : vector<16x128xf32>
    %c0_12 = arith.constant 0 : index
    %c0_13 = arith.constant 0 : index
    %18 = vector.load %arg6[%c0_12, %c0_13] : memref<128x128xbf16, #tpu.memory_space<vmem>>, vector<128x128xbf16>
    %c0_14 = arith.constant 0 : index
    %c0_15 = arith.constant 0 : index
    %19 = vector.load %arg7[%c0_14, %c0_15] : memref<1x128xf32, #tpu.memory_space<vmem>>, vector<1x128xf32>
    %20 = arith.truncf %17 : vector<16x128xf32> to vector<16x128xbf16>
    %cst_16 = arith.constant dense<0.000000e+00> : vector<16x128xf32>
    %21 = tpu.matmul %20, %18, %cst_16 {dimension_numbers = #tpu.dot_dimension_numbers<[1], [0], [0], [1], [0, 0, 1, 1], [], []>} : vector<16x128xbf16>, vector<128x128xbf16>, vector<16x128xf32> -> vector<16x128xf32>
    %22 = vector.broadcast %19 : vector<1x128xf32> to vector<16x128xf32>
    %23 = arith.addf %21, %22 : vector<16x128xf32>
    %cst_17 = arith.constant 0.000000e+00 : f32
    %24 = vector.broadcast %cst_17 : f32 to vector<16x128xf32>
    %25 = arith.subf %24, %23 : vector<16x128xf32>
    %26 = math.exp %25 : vector<16x128xf32>
    %cst_18 = arith.constant 1.000000e+00 : f32
    %27 = vector.broadcast %cst_18 : f32 to vector<16x128xf32>
    %28 = arith.addf %27, %26 : vector<16x128xf32>
    %29 = tpu.reciprocal %28 {approx = true} : vector<16x128xf32> -> vector<16x128xf32>
    %c0_19 = arith.constant 0 : index
    %c0_20 = arith.constant 0 : index
    %30 = vector.load %arg8[%c0_19, %c0_20] : memref<16x128xf32, #tpu.memory_space<vmem>>, vector<16x128xf32>
    tpu.vector_store %arg8[%c0_19, %c0_20], %29 {strides = array<i32>} : memref<16x128xf32, #tpu.memory_space<vmem>>, vector<16x128xf32>,
    return
  }
  func.func @transform_0(%arg0: i32) -> (i32, i32) {
    %c0_i32 = arith.constant 0 : i32
    %c0_i32_0 = arith.constant 0 : i32
    return %arg0, %c0_i32 : i32, i32
  }
  func.func @transform_1(%arg0: i32) -> (i32, i32) {
    %c0_i32 = arith.constant 0 : i32
    %c0_i32_0 = arith.constant 0 : i32
    %c0_i32_1 = arith.constant 0 : i32
    return %c0_i32, %c0_i32_0 : i32, i32
  }
  func.func @transform_2(%arg0: i32) -> (i32, i32) {
    %c0_i32 = arith.constant 0 : i32
    %c0_i32_0 = arith.constant 0 : i32
    %c0_i32_1 = arith.constant 0 : i32
    return %c0_i32, %c0_i32_0 : i32, i32
  }
  func.func @transform_3(%arg0: i32) -> (i32, i32) {
    %c0_i32 = arith.constant 0 : i32
    %c0_i32_0 = arith.constant 0 : i32
    %c0_i32_1 = arith.constant 0 : i32
    return %c0_i32, %c0_i32_0 : i32, i32
  }
  func.func @transform_4(%arg0: i32) -> (i32, i32) {
    %c0_i32 = arith.constant 0 : i32
    %c0_i32_0 = arith.constant 0 : i32
    %c0_i32_1 = arith.constant 0 : i32
    return %c0_i32, %c0_i32_0 : i32, i32
  }
  func.func @transform_5(%arg0: i32) -> (i32, i32) {
    %c0_i32 = arith.constant 0 : i32
    %c0_i32_0 = arith.constant 0 : i32
    %c0_i32_1 = arith.constant 0 : i32
    return %c0_i32, %c0_i32_0 : i32, i32
  }
  func.func @transform_6(%arg0: i32) -> (i32, i32) {
    %c0_i32 = arith.constant 0 : i32
    %c0_i32_0 = arith.constant 0 : i32
    %c0_i32_1 = arith.constant 0 : i32
    return %c0_i32, %c0_i32_0 : i32, i32
  }
  func.func @transform_7(%arg0: i32) -> (i32, i32) {
    %c0_i32 = arith.constant 0 : i32
    %c0_i32_0 = arith.constant 0 : i32
    return %arg0, %c0_i32 : i32, i32
  }
}

</mosaic_0001>

<llo_original>
// kernel: tpu_custom_call.1
$region0: #{tpu_custom_call.1}
  #allocation0 [shape = 'u32[]', space=smem, size = 0x4, offset = 0x4, fixed_abs, tag = 'smem constant byte address 0x4 - core index']
  #allocation1 [shape = 'u32[72,128]{1,0:T(1,128)}', space=vmem, size = 0x9000, scoped, tag = 'internal scratch']
  %s0 = inlined_call_operand.hbm [shape: bf16[16,128], index: 0, kind: input, shape index: {}]
  %s1 = inlined_call_operand.hbm [shape: bf16[128,128], index: 1, kind: input, shape index: {}]
  %s2 = inlined_call_operand.vmem [shape: f32[1,128], index: 2, kind: input, shape index: {}]
  %s3 = inlined_call_operand.hbm [shape: bf16[128,128], index: 3, kind: input, shape index: {}]
  %s4 = inlined_call_operand.vmem [shape: f32[1,128], index: 4, kind: input, shape index: {}]
  %s5 = inlined_call_operand.hbm [shape: bf16[128,128], index: 5, kind: input, shape index: {}]
  %s6 = inlined_call_operand.vmem [shape: f32[1,128], index: 6, kind: input, shape index: {}]
  %s7 = inlined_call_operand.hbm [shape: f32[16,128], index: 7, kind: output, shape index: {}]
  %s8 = sld [smem:[#allocation0]]
  $region54: #{tpu_custom_call.1} parent=0
    _
  %s10 = ssub.s32 1, %s8
  %s11 = scalar_select 0, %s10, %s8
  $region1: #{tpu_custom_call.1} parent=0
    #allocation2 [shape = 'u8[4096]{0}', space=vmem, size = 0x1000, scoped, tag = 'input window, operand 0, single buffered']
    #allocation3 [shape = 's32[1]{0}', space=sflag, size = 0x4, scoped, tag = 'scoped memory for tpu_custom_call.1']
    #allocation4 [shape = 's32[1]{0}', space=sflag, size = 0x4, scoped, tag = 'scoped memory for tpu_custom_call.1']
    #allocation5 [shape = 'u8[32768]{0}', space=vmem, size = 0x8000, scoped, tag = 'input window, operand 1, single buffered']
    #allocation6 [shape = 's32[1]{0}', space=sflag, size = 0x4, scoped, tag = 'scoped memory for tpu_custom_call.1']
    #allocation7 [shape = 'u8[32768]{0}', space=vmem, size = 0x8000, scoped, tag = 'input window, operand 3, single buffered']
    #allocation8 [shape = 'u8[32768]{0}', space=vmem, size = 0x8000, scoped, tag = 'input window, operand 5, single buffered']
    #allocation9 [shape = 's32[1]{0}', space=sflag, size = 0x4, scoped, tag = 'scoped memory for tpu_custom_call.1']
    #allocation10 [shape = 'u8[8192]{0}', space=vmem, size = 0x2000, scoped, tag = 'output window, operand 0, single buffered']
    %12 = vsyncpa [#allocation3], 0
    %13 = vsyncpa [#allocation6], 0
    %14 = vsyncpa [#allocation9], 0
    %15 = vsyncpa [#allocation4], 0
    // Predicated region
    $region2: #{tpu_custom_call.1} parent=1 // pred_check
      _
    $region3: #{tpu_custom_call.1} parent=1 // pred_check_branch
      %17 = sbr.rel (0) target = $region5
    $region4: #{tpu_custom_call.1} parent=1 // pred_region
      %19 = vsyncadd [#allocation3], 0
      %s20 = sshll.u32 %s0, 4
      %s21 = int_to_ptr.hbm [resolvable:$true] %s20
      %s22 = sshll.u32 [#allocation2], 4
      %s23 = int_to_ptr.vmem [resolvable:$true] %s22
      %28 = dma.hbm_to_vmem [thread:$0]  %s21, 128, %s23, [#allocation3], 64, 64, 4
    $region5: #{tpu_custom_call.1} parent=1 // pred_fallthru
      _
    // Predicated region
    $region6: #{tpu_custom_call.1} parent=1 // pred_check
      _
    $region7: #{tpu_custom_call.1} parent=1 // pred_check_branch
      %30 = sbr.rel (0) target = $region9
    $region8: #{tpu_custom_call.1} parent=1 // pred_region
      %32 = vsyncadd [#allocation6], 0
      %s33 = sshll.u32 %s1, 4
      %s34 = int_to_ptr.hbm [resolvable:$true] %s33
      %s35 = sshll.u32 [#allocation5], 4
      %s36 = int_to_ptr.vmem [resolvable:$true] %s35
      %41 = dma.hbm_to_vmem [thread:$0]  %s34, 1024, %s36, [#allocation6], 64, 64, 4
    $region9: #{tpu_custom_call.1} parent=1 // pred_fallthru
      _
    // Predicated region
    $region10: #{tpu_custom_call.1} parent=1 // pred_check
      _
    $region11: #{tpu_custom_call.1} parent=1 // pred_check_branch
      %43 = sbr.rel (0) target = $region13
    $region12: #{tpu_custom_call.1} parent=1 // pred_region
      _
    $region13: #{tpu_custom_call.1} parent=1 // pred_fallthru
      _
    // Predicated region
    $region14: #{tpu_custom_call.1} parent=1 // pred_check
      _
    $region15: #{tpu_custom_call.1} parent=1 // pred_check_branch
      %45 = sbr.rel (0) target = $region17
    $region16: #{tpu_custom_call.1} parent=1 // pred_region
      %47 = vsyncadd [#allocation6], 0
      %s48 = sshll.u32 %s3, 4
      %s49 = int_to_ptr.hbm [resolvable:$true] %s48
      %s50 = sshll.u32 [#allocation7], 4
      %s51 = int_to_ptr.vmem [resolvable:$true] %s50
      %56 = dma.hbm_to_vmem [thread:$0]  %s49, 1024, %s51, [#allocation6], 64, 64, 4
    $region17: #{tpu_custom_call.1} parent=1 // pred_fallthru
      _
    // Predicated region
    $region18: #{tpu_custom_call.1} parent=1 // pred_check
      _
    $region19: #{tpu_custom_call.1} parent=1 // pred_check_branch
      %58 = sbr.rel (0) target = $region21
    $region20: #{tpu_custom_call.1} parent=1 // pred_region
      _
    $region21: #{tpu_custom_call.1} parent=1 // pred_fallthru
      _
    // Predicated region
    $region22: #{tpu_custom_call.1} parent=1 // pred_check
      _
    $region23: #{tpu_custom_call.1} parent=1 // pred_check_branch
      %60 = sbr.rel (0) target = $region25
    $region24: #{tpu_custom_call.1} parent=1 // pred_region
      %62 = vsyncadd [#allocation9], 0
      %s63 = sshll.u32 %s5, 4
      %s64 = int_to_ptr.hbm [resolvable:$true] %s63
      %s65 = sshll.u32 [#allocation8], 4
      %s66 = int_to_ptr.vmem [resolvable:$true] %s65
      %71 = dma.hbm_to_vmem [thread:$0]  %s64, 1024, %s66, [#allocation9], 64, 64, 4
    $region25: #{tpu_custom_call.1} parent=1 // pred_fallthru
      _
    // Predicated region
    $region26: #{tpu_custom_call.1} parent=1 // pred_check
      _
    $region27: #{tpu_custom_call.1} parent=1 // pred_check_branch
      %73 = sbr.rel (0) target = $region29
    $region28: #{tpu_custom_call.1} parent=1 // pred_region
      _
    $region29: #{tpu_custom_call.1} parent=1 // pred_fallthru
      _
    // Predicated region
    $region30: #{tpu_custom_call.1} parent=1 // pred_check
      _
    $region31: #{tpu_custom_call.1} parent=1 // pred_check_branch
      %75 = sbr.rel (0) target = $region33
    $region32: #{tpu_custom_call.1} parent=1 // pred_region
      %77 = dma.done [#allocation3], 128
    $region33: #{tpu_custom_call.1} parent=1 // pred_fallthru
      _
    // Predicated region
    $region34: #{tpu_custom_call.1} parent=1 // pred_check
      _
    $region35: #{tpu_custom_call.1} parent=1 // pred_check_branch
      %79 = sbr.rel (0) target = $region37
    $region36: #{tpu_custom_call.1} parent=1 // pred_region
      %81 = dma.done [#allocation6], 1024
    $region37: #{tpu_custom_call.1} parent=1 // pred_fallthru
      _
    // Predicated region
    $region38: #{tpu_custom_call.1} parent=1 // pred_check
      _
    $region39: #{tpu_custom_call.1} parent=1 // pred_check_branch
      %83 = sbr.rel (0) target = $region41
    $region40: #{tpu_custom_call.1} parent=1 // pred_region
      %85 = dma.done [#allocation6], 1024
    $region41: #{tpu_custom_call.1} parent=1 // pred_fallthru
      _
    // Predicated region
    $region42: #{tpu_custom_call.1} parent=1 // pred_check
      _
    $region43: #{tpu_custom_call.1} parent=1 // pred_check_branch
      %87 = sbr.rel (0) target = $region45
    $region44: #{tpu_custom_call.1} parent=1 // pred_region
      %89 = dma.done [#allocation9], 1024
    $region45: #{tpu_custom_call.1} parent=1 // pred_fallthru
      _
    %v90 = vld [vmem:[#allocation2] sm:$0xf]
    %v91 = vld [vmem:[#allocation2 + $0x4] sm:$0xf]
    %v92 = vld [vmem:[#allocation5] sm:$0xf]
    %v93 = vld [vmem:[#allocation5 + $0x4] sm:$0xf]
    %v94 = vld [vmem:[#allocation5 + $0x8] sm:$0xf]
    %v95 = vld [vmem:[#allocation5 + $0xc] sm:$0xf]
    %v96 = vld [vmem:[#allocation5 + $0x10] sm:$0xf]
    %v97 = vld [vmem:[#allocation5 + $0x14] sm:$0xf]
    %v98 = vld [vmem:[#allocation5 + $0x18] sm:$0xf]
    %v99 = vld [vmem:[#allocation5 + $0x1c] sm:$0xf]
    %v100 = vld [vmem:[#allocation5 + $0x20] sm:$0xf]
    %v101 = vld [vmem:[#allocation5 + $0x24] sm:$0xf]
    %v102 = vld [vmem:[#allocation5 + $0x28] sm:$0xf]
    %v103 = vld [vmem:[#allocation5 + $0x2c] sm:$0xf]
    %v104 = vld [vmem:[#allocation5 + $0x30] sm:$0xf]
    %v105 = vld [vmem:[#allocation5 + $0x34] sm:$0xf]
    %v106 = vld [vmem:[#allocation5 + $0x38] sm:$0xf]
    %v107 = vld [vmem:[#allocation5 + $0x3c] sm:$0xf]
    %v108 = vld [vmem:[%s2] sm:$0x1]
    %v110 = vperm.slane %v108, 0
    %v114 = vunpack.c.l.b16 %v90
    %v115 = vunpack.c.l.b16 %v91
    %v116 = vpack.c.b16 %v115, %v114
    %v134 = vunpack.c.l.b16 %v92
    %v135 = vunpack.c.l.b16 %v93
    %v136 = vunpack.c.l.b16 %v94
    %v137 = vunpack.c.l.b16 %v95
    %v138 = vunpack.c.l.b16 %v96
    %v139 = vunpack.c.l.b16 %v97
    %v140 = vunpack.c.l.b16 %v98
    %v141 = vunpack.c.l.b16 %v99
    %v142 = vunpack.c.l.b16 %v100
    %v143 = vunpack.c.l.b16 %v101
    %v144 = vunpack.c.l.b16 %v102
    %v145 = vunpack.c.l.b16 %v103
    %v146 = vunpack.c.l.b16 %v104
    %v147 = vunpack.c.l.b16 %v105
    %v148 = vunpack.c.l.b16 %v106
    %v149 = vunpack.c.l.b16 %v107
    %v150 = vpack.c.b16 %v135, %v134
    %v151 = vpack.c.b16 %v137, %v136
    %v152 = vpack.c.b16 %v139, %v138
    %v153 = vpack.c.b16 %v141, %v140
    %v154 = vpack.c.b16 %v143, %v142
    %v155 = vpack.c.b16 %v145, %v144
    %v156 = vpack.c.b16 %v147, %v146
    %v157 = vpack.c.b16 %v149, %v148
    %166 = vmatpush.bf16.msra.mxu0 %v157
    %167 = vmatpush.bf16.msra.mxu0 %v156
    %168 = vmatpush.bf16.msra.mxu0 %v155
    %169 = vmatpush.bf16.msra.mxu0 %v154
    %170 = vmatpush.bf16.msra.mxu0 %v153
    %171 = vmatpush.bf16.msra.mxu0 %v152
    %172 = vmatpush.bf16.msra.mxu0 %v151
    %173 = vmatpush.bf16.msra.mxu0 %v150
    %174 = vmatmul.bf16.gmra.mxu0 %v116
    %v175 = vpop.f32.mrf.mxu0
    %v176 = vadd.f32 %v110, %v175
    %v177 = vpop.f32.mrf.mxu0
    %v178 = vadd.f32 %v110, %v177
    %179 = vdwg.mxu0
    %v180 = vmul.f32 %v176, 0.01
    %v181 = vmul.f32 %v178, 0.01
    %v182 = vmax.f32 %v176, %v180
    %v183 = vmax.f32 %v178, %v181
    %v184 = vld [vmem:[#allocation7] sm:$0xf]
    %v185 = vld [vmem:[#allocation7 + $0x4] sm:$0xf]
    %v186 = vld [vmem:[#allocation7 + $0x8] sm:$0xf]
    %v187 = vld [vmem:[#allocation7 + $0xc] sm:$0xf]
    %v188 = vld [vmem:[#allocation7 + $0x10] sm:$0xf]
    %v189 = vld [vmem:[#allocation7 + $0x14] sm:$0xf]
    %v190 = vld [vmem:[#allocation7 + $0x18] sm:$0xf]
    %v191 = vld [vmem:[#allocation7 + $0x1c] sm:$0xf]
    %v192 = vld [vmem:[#allocation7 + $0x20] sm:$0xf]
    %v193 = vld [vmem:[#allocation7 + $0x24] sm:$0xf]
    %v194 = vld [vmem:[#allocation7 + $0x28] sm:$0xf]
    %v195 = vld [vmem:[#allocation7 + $0x2c] sm:$0xf]
    %v196 = vld [vmem:[#allocation7 + $0x30] sm:$0xf]
    %v197 = vld [vmem:[#allocation7 + $0x34] sm:$0xf]
    %v198 = vld [vmem:[#allocation7 + $0x38] sm:$0xf]
    %v199 = vld [vmem:[#allocation7 + $0x3c] sm:$0xf]
    %v200 = vld [vmem:[%s4] sm:$0x1]
    %v201 = vpack.c.bf16 %v183, %v182
    %v203 = vperm.slane %v200, 0
    %v221 = vunpack.c.l.b16 %v184
    %v222 = vunpack.c.l.b16 %v185
    %v223 = vunpack.c.l.b16 %v186
    %v224 = vunpack.c.l.b16 %v187
    %v225 = vunpack.c.l.b16 %v188
    %v226 = vunpack.c.l.b16 %v189
    %v227 = vunpack.c.l.b16 %v190
    %v228 = vunpack.c.l.b16 %v191
    %v229 = vunpack.c.l.b16 %v192
    %v230 = vunpack.c.l.b16 %v193
    %v231 = vunpack.c.l.b16 %v194
    %v232 = vunpack.c.l.b16 %v195
    %v233 = vunpack.c.l.b16 %v196
    %v234 = vunpack.c.l.b16 %v197
    %v235 = vunpack.c.l.b16 %v198
    %v236 = vunpack.c.l.b16 %v199
    %v237 = vpack.c.b16 %v222, %v221
    %v238 = vpack.c.b16 %v224, %v223
    %v239 = vpack.c.b16 %v226, %v225
    %v240 = vpack.c.b16 %v228, %v227
    %v241 = vpack.c.b16 %v230, %v229
    %v242 = vpack.c.b16 %v232, %v231
    %v243 = vpack.c.b16 %v234, %v233
    %v244 = vpack.c.b16 %v236, %v235
    %253 = vmatpush.bf16.msra.mxu0 %v244
    %254 = vmatpush.bf16.msra.mxu0 %v243
    %255 = vmatpush.bf16.msra.mxu0 %v242
    %256 = vmatpush.bf16.msra.mxu0 %v241
    %257 = vmatpush.bf16.msra.mxu0 %v240
    %258 = vmatpush.bf16.msra.mxu0 %v239
    %259 = vmatpush.bf16.msra.mxu0 %v238
    %260 = vmatpush.bf16.msra.mxu0 %v237
    %261 = vmatmul.bf16.gmra.mxu0 %v201
    %v262 = vpop.f32.mrf.mxu0
    %v263 = vadd.f32 %v203, %v262
    %v264 = vpop.f32.mrf.mxu0
    %v265 = vadd.f32 %v203, %v264
    %266 = vdwg.mxu0
    %v267 = vmul.f32 %v263, 0.01
    %v268 = vmul.f32 %v265, 0.01
    %v269 = vmax.f32 %v263, %v267
    %v270 = vmax.f32 %v265, %v268
    %v271 = vld [vmem:[#allocation8] sm:$0xf]
    %v272 = vld [vmem:[#allocation8 + $0x4] sm:$0xf]
    %v273 = vld [vmem:[#allocation8 + $0x8] sm:$0xf]
    %v274 = vld [vmem:[#allocation8 + $0xc] sm:$0xf]
    %v275 = vld [vmem:[#allocation8 + $0x10] sm:$0xf]
    %v276 = vld [vmem:[#allocation8 + $0x14] sm:$0xf]
    %v277 = vld [vmem:[#allocation8 + $0x18] sm:$0xf]
    %v278 = vld [vmem:[#allocation8 + $0x1c] sm:$0xf]
    %v279 = vld [vmem:[#allocation8 + $0x20] sm:$0xf]
    %v280 = vld [vmem:[#allocation8 + $0x24] sm:$0xf]
    %v281 = vld [vmem:[#allocation8 + $0x28] sm:$0xf]
    %v282 = vld [vmem:[#allocation8 + $0x2c] sm:$0xf]
    %v283 = vld [vmem:[#allocation8 + $0x30] sm:$0xf]
    %v284 = vld [vmem:[#allocation8 + $0x34] sm:$0xf]
    %v285 = vld [vmem:[#allocation8 + $0x38] sm:$0xf]
    %v286 = vld [vmem:[#allocation8 + $0x3c] sm:$0xf]
    %v287 = vld [vmem:[%s6] sm:$0x1]
    %v288 = vpack.c.bf16 %v270, %v269
    %v290 = vperm.slane %v287, 0
    %v308 = vunpack.c.l.b16 %v271
    %v309 = vunpack.c.l.b16 %v272
    %v310 = vunpack.c.l.b16 %v273
    %v311 = vunpack.c.l.b16 %v274
    %v312 = vunpack.c.l.b16 %v275
    %v313 = vunpack.c.l.b16 %v276
    %v314 = vunpack.c.l.b16 %v277
    %v315 = vunpack.c.l.b16 %v278
    %v316 = vunpack.c.l.b16 %v279
    %v317 = vunpack.c.l.b16 %v280
    %v318 = vunpack.c.l.b16 %v281
    %v319 = vunpack.c.l.b16 %v282
    %v320 = vunpack.c.l.b16 %v283
    %v321 = vunpack.c.l.b16 %v284
    %v322 = vunpack.c.l.b16 %v285
    %v323 = vunpack.c.l.b16 %v286
    %v324 = vpack.c.b16 %v309, %v308
    %v325 = vpack.c.b16 %v311, %v310
    %v326 = vpack.c.b16 %v313, %v312
    %v327 = vpack.c.b16 %v315, %v314
    %v328 = vpack.c.b16 %v317, %v316
    %v329 = vpack.c.b16 %v319, %v318
    %v330 = vpack.c.b16 %v321, %v320
    %v331 = vpack.c.b16 %v323, %v322
    %340 = vmatpush.bf16.msra.mxu0 %v331
    %341 = vmatpush.bf16.msra.mxu0 %v330
    %342 = vmatpush.bf16.msra.mxu0 %v329
    %343 = vmatpush.bf16.msra.mxu0 %v328
    %344 = vmatpush.bf16.msra.mxu0 %v327
    %345 = vmatpush.bf16.msra.mxu0 %v326
    %346 = vmatpush.bf16.msra.mxu0 %v325
    %347 = vmatpush.bf16.msra.mxu0 %v324
    %348 = vmatmul.bf16.gmra.mxu0 %v288
    %v349 = vpop.f32.mrf.mxu0
    %v350 = vadd.f32 %v290, %v349
    %v351 = vpop.f32.mrf.mxu0
    %v352 = vadd.f32 %v290, %v351
    %353 = vdwg.mxu0
    %v354 = vsub.f32 0.0, %v350
    %v355 = vsub.f32 0.0, %v352
    %v356 = vmul.f32 %v354, 1.442695
    %v357 = vpow.pop %v356
    %v358 = vmul.f32 %v355, 1.442695
    %v359 = vpow.pop %v358
    %v360 = vadd.f32 %v357, 1.0
    %v361 = vadd.f32 %v359, 1.0
    %v362 = vrcp.pop %v360
    %v363 = vrcp.pop %v361
    %364 = vst [vmem:[#allocation10] sm:$0xff] %v362
    %365 = vst [vmem:[#allocation10 + $0x8] sm:$0xff] %v363
    // Predicated region
    $region46: #{tpu_custom_call.1} parent=1 // pred_check
      _
    $region47: #{tpu_custom_call.1} parent=1 // pred_check_branch
      %367 = sbr.rel (0) target = $region49
    $region48: #{tpu_custom_call.1} parent=1 // pred_region
      %369 = vsyncadd [#allocation4], 0
      %s370 = sshll.u32 [#allocation10], 4
      %s371 = int_to_ptr.vmem [resolvable:$true] %s370
      %s372 = sshll.u32 %s7, 4
      %s373 = int_to_ptr.hbm [resolvable:$true] %s372
      %378 = dma.vmem_to_hbm [thread:$0]  %s371, 256, %s373, [#allocation4], 128, 128, 8
    $region49: #{tpu_custom_call.1} parent=1 // pred_fallthru
      _
    // Predicated region
    $region50: #{tpu_custom_call.1} parent=1 // pred_check
      _
    $region51: #{tpu_custom_call.1} parent=1 // pred_check_branch
      %380 = sbr.rel (0) target = $region53
    $region52: #{tpu_custom_call.1} parent=1 // pred_region
      %382 = dma.done [#allocation4], 256
    $region53: #{tpu_custom_call.1} parent=1 // pred_fallthru
      _
    %383 = vsyncpa [#allocation3], 1
    %384 = vsyncpa [#allocation6], 1
    %385 = vsyncpa [#allocation9], 1
    %386 = vsyncpa [#allocation4], 1

// kernel: tpu_custom_call.1
$region0: #{tpu_custom_call.1}
  #allocation0 [shape = 'u32[]', space=smem, size = 0x4, offset = 0x4, fixed_abs, tag = 'smem constant byte address 0x4 - core index']
  #allocation1 [shape = 'u32[72,128]{1,0:T(1,128)}', space=vmem, size = 0x9000, scoped, tag = 'internal scratch']
  %s0 = inlined_call_operand.hbm [shape: bf16[16,128], index: 0, kind: input, shape index: {}]
  %s1 = inlined_call_operand.hbm [shape: bf16[128,128], index: 1, kind: input, shape index: {}]
  %s2 = inlined_call_operand.vmem [shape: f32[1,128], index: 2, kind: input, shape index: {}]
  %s3 = inlined_call_operand.hbm [shape: bf16[128,128], index: 3, kind: input, shape index: {}]
  %s4 = inlined_call_operand.vmem [shape: f32[1,128], index: 4, kind: input, shape index: {}]
  %s5 = inlined_call_operand.hbm [shape: bf16[128,128], index: 5, kind: input, shape index: {}]
  %s6 = inlined_call_operand.vmem [shape: f32[1,128], index: 6, kind: input, shape index: {}]
  %s7 = inlined_call_operand.hbm [shape: f32[16,128], index: 7, kind: output, shape index: {}]
  %s8 = sld [smem:[#allocation0]]
  $region54: #{tpu_custom_call.1} parent=0
    _
  %s10 = ssub.s32 1, %s8
  %s11 = scalar_select 0, %s10, %s8
  $region1: #{tpu_custom_call.1} parent=0
    #allocation2 [shape = 'u8[4096]{0}', space=vmem, size = 0x1000, scoped, tag = 'input window, operand 0, single buffered']
    #allocation3 [shape = 's32[1]{0}', space=sflag, size = 0x4, scoped, tag = 'scoped memory for tpu_custom_call.1']
    #allocation4 [shape = 's32[1]{0}', space=sflag, size = 0x4, scoped, tag = 'scoped memory for tpu_custom_call.1']
    #allocation5 [shape = 'u8[32768]{0}', space=vmem, size = 0x8000, scoped, tag = 'input window, operand 1, single buffered']
    #allocation6 [shape = 's32[1]{0}', space=sflag, size = 0x4, scoped, tag = 'scoped memory for tpu_custom_call.1']
    #allocation7 [shape = 'u8[32768]{0}', space=vmem, size = 0x8000, scoped, tag = 'input window, operand 3, single buffered']
    #allocation8 [shape = 'u8[32768]{0}', space=vmem, size = 0x8000, scoped, tag = 'input window, operand 5, single buffered']
    #allocation9 [shape = 's32[1]{0}', space=sflag, size = 0x4, scoped, tag = 'scoped memory for tpu_custom_call.1']
    #allocation10 [shape = 'u8[8192]{0}', space=vmem, size = 0x2000, scoped, tag = 'output window, operand 0, single buffered']
    %12 = vsyncpa [#allocation3], 0
    %13 = vsyncpa [#allocation6], 0
    %14 = vsyncpa [#allocation9], 0
    %15 = vsyncpa [#allocation4], 0
    // Predicated region
    $region2: #{tpu_custom_call.1} parent=1 // pred_check
      _
    $region3: #{tpu_custom_call.1} parent=1 // pred_check_branch
      %17 = sbr.rel (0) target = $region5
    $region4: #{tpu_custom_call.1} parent=1 // pred_region
      %19 = vsyncadd [#allocation3], 0
      %s20 = sshll.u32 %s0, 4
      %s21 = int_to_ptr.hbm [resolvable:$true] %s20
      %s22 = sshll.u32 [#allocation2], 4
      %s23 = int_to_ptr.vmem [resolvable:$true] %s22
      %28 = dma.hbm_to_vmem [thread:$0]  %s21, 128, %s23, [#allocation3], 64, 64, 4
    $region5: #{tpu_custom_call.1} parent=1 // pred_fallthru
      _
    // Predicated region
    $region6: #{tpu_custom_call.1} parent=1 // pred_check
      _
    $region7: #{tpu_custom_call.1} parent=1 // pred_check_branch
      %30 = sbr.rel (0) target = $region9
    $region8: #{tpu_custom_call.1} parent=1 // pred_region
      %32 = vsyncadd [#allocation6], 0
      %s33 = sshll.u32 %s1, 4
      %s34 = int_to_ptr.hbm [resolvable:$true] %s33
      %s35 = sshll.u32 [#allocation5], 4
      %s36 = int_to_ptr.vmem [resolvable:$true] %s35
      %41 = dma.hbm_to_vmem [thread:$0]  %s34, 1024, %s36, [#allocation6], 64, 64, 4
    $region9: #{tpu_custom_call.1} parent=1 // pred_fallthru
      _
    // Predicated region
    $region10: #{tpu_custom_call.1} parent=1 // pred_check
      _
    $region11: #{tpu_custom_call.1} parent=1 // pred_check_branch
      %43 = sbr.rel (0) target = $region13
    $region12: #{tpu_custom_call.1} parent=1 // pred_region
      _
    $region13: #{tpu_custom_call.1} parent=1 // pred_fallthru
      _
    // Predicated region
    $region14: #{tpu_custom_call.1} parent=1 // pred_check
      _
    $region15: #{tpu_custom_call.1} parent=1 // pred_check_branch
      %45 = sbr.rel (0) target = $region17
    $region16: #{tpu_custom_call.1} parent=1 // pred_region
      %47 = vsyncadd [#allocation6], 0
      %s48 = sshll.u32 %s3, 4
      %s49 = int_to_ptr.hbm [resolvable:$true] %s48
      %s50 = sshll.u32 [#allocation7], 4
      %s51 = int_to_ptr.vmem [resolvable:$true] %s50
      %56 = dma.hbm_to_vmem [thread:$0]  %s49, 1024, %s51, [#allocation6], 64, 64, 4
    $region17: #{tpu_custom_call.1} parent=1 // pred_fallthru
      _
    // Predicated region
    $region18: #{tpu_custom_call.1} parent=1 // pred_check
      _
    $region19: #{tpu_custom_call.1} parent=1 // pred_check_branch
      %58 = sbr.rel (0) target = $region21
    $region20: #{tpu_custom_call.1} parent=1 // pred_region
      _
    $region21: #{tpu_custom_call.1} parent=1 // pred_fallthru
      _
    // Predicated region
    $region22: #{tpu_custom_call.1} parent=1 // pred_check
      _
    $region23: #{tpu_custom_call.1} parent=1 // pred_check_branch
      %60 = sbr.rel (0) target = $region25
    $region24: #{tpu_custom_call.1} parent=1 // pred_region
      %62 = vsyncadd [#allocation9], 0
      %s63 = sshll.u32 %s5, 4
      %s64 = int_to_ptr.hbm [resolvable:$true] %s63
      %s65 = sshll.u32 [#allocation8], 4
      %s66 = int_to_ptr.vmem [resolvable:$true] %s65
      %71 = dma.hbm_to_vmem [thread:$0]  %s64, 1024, %s66, [#allocation9], 64, 64, 4
    $region25: #{tpu_custom_call.1} parent=1 // pred_fallthru
      _
    // Predicated region
    $region26: #{tpu_custom_call.1} parent=1 // pred_check
      _
    $region27: #{tpu_custom_call.1} parent=1 // pred_check_branch
      %73 = sbr.rel (0) target = $region29
    $region28: #{tpu_custom_call.1} parent=1 // pred_region
      _
    $region29: #{tpu_custom_call.1} parent=1 // pred_fallthru
      _
    // Predicated region
    $region30: #{tpu_custom_call.1} parent=1 // pred_check
      _
    $region31: #{tpu_custom_call.1} parent=1 // pred_check_branch
      %75 = sbr.rel (0) target = $region33
    $region32: #{tpu_custom_call.1} parent=1 // pred_region
      %77 = dma.done [#allocation3], 128
    $region33: #{tpu_custom_call.1} parent=1 // pred_fallthru
      _
    // Predicated region
    $region34: #{tpu_custom_call.1} parent=1 // pred_check
      _
    $region35: #{tpu_custom_call.1} parent=1 // pred_check_branch
      %79 = sbr.rel (0) target = $region37
    $region36: #{tpu_custom_call.1} parent=1 // pred_region
      %81 = dma.done [#allocation6], 1024
    $region37: #{tpu_custom_call.1} parent=1 // pred_fallthru
      _
    // Predicated region
    $region38: #{tpu_custom_call.1} parent=1 // pred_check
      _
    $region39: #{tpu_custom_call.1} parent=1 // pred_check_branch
      %83 = sbr.rel (0) target = $region41
    $region40: #{tpu_custom_call.1} parent=1 // pred_region
      %85 = dma.done [#allocation6], 1024
    $region41: #{tpu_custom_call.1} parent=1 // pred_fallthru
      _
    // Predicated region
    $region42: #{tpu_custom_call.1} parent=1 // pred_check
      _
    $region43: #{tpu_custom_call.1} parent=1 // pred_check_branch
      %87 = sbr.rel (0) target = $region45
    $region44: #{tpu_custom_call.1} parent=1 // pred_region
      %89 = dma.done [#allocation9], 1024
    $region45: #{tpu_custom_call.1} parent=1 // pred_fallthru
      _
    %v90 = vld [vmem:[#allocation2] sm:$0xf]
    %v91 = vld [vmem:[#allocation2 + $0x4] sm:$0xf]
    %v92 = vld [vmem:[#allocation5] sm:$0xf]
    %v93 = vld [vmem:[#allocation5 + $0x4] sm:$0xf]
    %v94 = vld [vmem:[#allocation5 + $0x8] sm:$0xf]
    %v95 = vld [vmem:[#allocation5 + $0xc] sm:$0xf]
    %v96 = vld [vmem:[#allocation5 + $0x10] sm:$0xf]
    %v97 = vld [vmem:[#allocation5 + $0x14] sm:$0xf]
    %v98 = vld [vmem:[#allocation5 + $0x18] sm:$0xf]
    %v99 = vld [vmem:[#allocation5 + $0x1c] sm:$0xf]
    %v100 = vld [vmem:[#allocation5 + $0x20] sm:$0xf]
    %v101 = vld [vmem:[#allocation5 + $0x24] sm:$0xf]
    %v102 = vld [vmem:[#allocation5 + $0x28] sm:$0xf]
    %v103 = vld [vmem:[#allocation5 + $0x2c] sm:$0xf]
    %v104 = vld [vmem:[#allocation5 + $0x30] sm:$0xf]
    %v105 = vld [vmem:[#allocation5 + $0x34] sm:$0xf]
    %v106 = vld [vmem:[#allocation5 + $0x38] sm:$0xf]
    %v107 = vld [vmem:[#allocation5 + $0x3c] sm:$0xf]
    %v108 = vld [vmem:[%s2] sm:$0x1]
    %v110 = vperm.slane %v108, 0
    %v114 = vunpack.c.l.b16 %v90
    %v115 = vunpack.c.l.b16 %v91
    %v116 = vpack.c.b16 %v115, %v114
    %v134 = vunpack.c.l.b16 %v92
    %v135 = vunpack.c.l.b16 %v93
    %v136 = vunpack.c.l.b16 %v94
    %v137 = vunpack.c.l.b16 %v95
    %v138 = vunpack.c.l.b16 %v96
    %v139 = vunpack.c.l.b16 %v97
    %v140 = vunpack.c.l.b16 %v98
    %v141 = vunpack.c.l.b16 %v99
    %v142 = vunpack.c.l.b16 %v100
    %v143 = vunpack.c.l.b16 %v101
    %v144 = vunpack.c.l.b16 %v102
    %v145 = vunpack.c.l.b16 %v103
    %v146 = vunpack.c.l.b16 %v104
    %v147 = vunpack.c.l.b16 %v105
    %v148 = vunpack.c.l.b16 %v106
    %v149 = vunpack.c.l.b16 %v107
    %v150 = vpack.c.b16 %v135, %v134
    %v151 = vpack.c.b16 %v137, %v136
    %v152 = vpack.c.b16 %v139, %v138
    %v153 = vpack.c.b16 %v141, %v140
    %v154 = vpack.c.b16 %v143, %v142
    %v155 = vpack.c.b16 %v145, %v144
    %v156 = vpack.c.b16 %v147, %v146
    %v157 = vpack.c.b16 %v149, %v148
    %166 = vmatpush.bf16.msra.mxu0 %v157
    %167 = vmatpush.bf16.msra.mxu0 %v156
    %168 = vmatpush.bf16.msra.mxu0 %v155
    %169 = vmatpush.bf16.msra.mxu0 %v154
    %170 = vmatpush.bf16.msra.mxu0 %v153
    %171 = vmatpush.bf16.msra.mxu0 %v152
    %172 = vmatpush.bf16.msra.mxu0 %v151
    %173 = vmatpush.bf16.msra.mxu0 %v150
    %174 = vmatmul.bf16.gmra.mxu0 %v116
    %v175 = vpop.f32.mrf.mxu0
    %v176 = vadd.f32 %v110, %v175
    %v177 = vpop.f32.mrf.mxu0
    %v178 = vadd.f32 %v110, %v177
    %179 = vdwg.mxu0
    %v180 = vmul.f32 %v176, 0.01
    %v181 = vmul.f32 %v178, 0.01
    %v182 = vmax.f32 %v176, %v180
    %v183 = vmax.f32 %v178, %v181
    %v184 = vld [vmem:[#allocation7] sm:$0xf]
    %v185 = vld [vmem:[#allocation7 + $0x4] sm:$0xf]
    %v186 = vld [vmem:[#allocation7 + $0x8] sm:$0xf]
    %v187 = vld [vmem:[#allocation7 + $0xc] sm:$0xf]
    %v188 = vld [vmem:[#allocation7 + $0x10] sm:$0xf]
    %v189 = vld [vmem:[#allocation7 + $0x14] sm:$0xf]
    %v190 = vld [vmem:[#allocation7 + $0x18] sm:$0xf]
    %v191 = vld [vmem:[#allocation7 + $0x1c] sm:$0xf]
    %v192 = vld [vmem:[#allocation7 + $0x20] sm:$0xf]
    %v193 = vld [vmem:[#allocation7 + $0x24] sm:$0xf]
    %v194 = vld [vmem:[#allocation7 + $0x28] sm:$0xf]
    %v195 = vld [vmem:[#allocation7 + $0x2c] sm:$0xf]
    %v196 = vld [vmem:[#allocation7 + $0x30] sm:$0xf]
    %v197 = vld [vmem:[#allocation7 + $0x34] sm:$0xf]
    %v198 = vld [vmem:[#allocation7 + $0x38] sm:$0xf]
    %v199 = vld [vmem:[#allocation7 + $0x3c] sm:$0xf]
    %v200 = vld [vmem:[%s4] sm:$0x1]
    %v201 = vpack.c.bf16 %v183, %v182
    %v203 = vperm.slane %v200, 0
    %v221 = vunpack.c.l.b16 %v184
    %v222 = vunpack.c.l.b16 %v185
    %v223 = vunpack.c.l.b16 %v186
    %v224 = vunpack.c.l.b16 %v187
    %v225 = vunpack.c.l.b16 %v188
    %v226 = vunpack.c.l.b16 %v189
    %v227 = vunpack.c.l.b16 %v190
    %v228 = vunpack.c.l.b16 %v191
    %v229 = vunpack.c.l.b16 %v192
    %v230 = vunpack.c.l.b16 %v193
    %v231 = vunpack.c.l.b16 %v194
    %v232 = vunpack.c.l.b16 %v195
    %v233 = vunpack.c.l.b16 %v196
    %v234 = vunpack.c.l.b16 %v197
    %v235 = vunpack.c.l.b16 %v198
    %v236 = vunpack.c.l.b16 %v199
    %v237 = vpack.c.b16 %v222, %v221
    %v238 = vpack.c.b16 %v224, %v223
    %v239 = vpack.c.b16 %v226, %v225
    %v240 = vpack.c.b16 %v228, %v227
    %v241 = vpack.c.b16 %v230, %v229
    %v242 = vpack.c.b16 %v232, %v231
    %v243 = vpack.c.b16 %v234, %v233
    %v244 = vpack.c.b16 %v236, %v235
    %253 = vmatpush.bf16.msra.mxu0 %v244
    %254 = vmatpush.bf16.msra.mxu0 %v243
    %255 = vmatpush.bf16.msra.mxu0 %v242
    %256 = vmatpush.bf16.msra.mxu0 %v241
    %257 = vmatpush.bf16.msra.mxu0 %v240
    %258 = vmatpush.bf16.msra.mxu0 %v239
    %259 = vmatpush.bf16.msra.mxu0 %v238
    %260 = vmatpush.bf16.msra.mxu0 %v237
    %261 = vmatmul.bf16.gmra.mxu0 %v201
    %v262 = vpop.f32.mrf.mxu0
    %v263 = vadd.f32 %v203, %v262
    %v264 = vpop.f32.mrf.mxu0
    %v265 = vadd.f32 %v203, %v264
    %266 = vdwg.mxu0
    %v267 = vmul.f32 %v263, 0.01
    %v268 = vmul.f32 %v265, 0.01
    %v269 = vmax.f32 %v263, %v267
    %v270 = vmax.f32 %v265, %v268
    %v271 = vld [vmem:[#allocation8] sm:$0xf]
    %v272 = vld [vmem:[#allocation8 + $0x4] sm:$0xf]
    %v273 = vld [vmem:[#allocation8 + $0x8] sm:$0xf]
    %v274 = vld [vmem:[#allocation8 + $0xc] sm:$0xf]
    %v275 = vld [vmem:[#allocation8 + $0x10] sm:$0xf]
    %v276 = vld [vmem:[#allocation8 + $0x14] sm:$0xf]
    %v277 = vld [vmem:[#allocation8 + $0x18] sm:$0xf]
    %v278 = vld [vmem:[#allocation8 + $0x1c] sm:$0xf]
    %v279 = vld [vmem:[#allocation8 + $0x20] sm:$0xf]
    %v280 = vld [vmem:[#allocation8 + $0x24] sm:$0xf]
    %v281 = vld [vmem:[#allocation8 + $0x28] sm:$0xf]
    %v282 = vld [vmem:[#allocation8 + $0x2c] sm:$0xf]
    %v283 = vld [vmem:[#allocation8 + $0x30] sm:$0xf]
    %v284 = vld [vmem:[#allocation8 + $0x34] sm:$0xf]
    %v285 = vld [vmem:[#allocation8 + $0x38] sm:$0xf]
    %v286 = vld [vmem:[#allocation8 + $0x3c] sm:$0xf]
    %v287 = vld [vmem:[%s6] sm:$0x1]
    %v288 = vpack.c.bf16 %v270, %v269
    %v290 = vperm.slane %v287, 0
    %v308 = vunpack.c.l.b16 %v271
    %v309 = vunpack.c.l.b16 %v272
    %v310 = vunpack.c.l.b16 %v273
    %v311 = vunpack.c.l.b16 %v274
    %v312 = vunpack.c.l.b16 %v275
    %v313 = vunpack.c.l.b16 %v276
    %v314 = vunpack.c.l.b16 %v277
    %v315 = vunpack.c.l.b16 %v278
    %v316 = vunpack.c.l.b16 %v279
    %v317 = vunpack.c.l.b16 %v280
    %v318 = vunpack.c.l.b16 %v281
    %v319 = vunpack.c.l.b16 %v282
    %v320 = vunpack.c.l.b16 %v283
    %v321 = vunpack.c.l.b16 %v284
    %v322 = vunpack.c.l.b16 %v285
    %v323 = vunpack.c.l.b16 %v286
    %v324 = vpack.c.b16 %v309, %v308
    %v325 = vpack.c.b16 %v311, %v310
    %v326 = vpack.c.b16 %v313, %v312
    %v327 = vpack.c.b16 %v315, %v314
    %v328 = vpack.c.b16 %v317, %v316
    %v329 = vpack.c.b16 %v319, %v318
    %v330 = vpack.c.b16 %v321, %v320
    %v331 = vpack.c.b16 %v323, %v322
    %340 = vmatpush.bf16.msra.mxu0 %v331
    %341 = vmatpush.bf16.msra.mxu0 %v330
    %342 = vmatpush.bf16.msra.mxu0 %v329
    %343 = vmatpush.bf16.msra.mxu0 %v328
    %344 = vmatpush.bf16.msra.mxu0 %v327
    %345 = vmatpush.bf16.msra.mxu0 %v326
    %346 = vmatpush.bf16.msra.mxu0 %v325
    %347 = vmatpush.bf16.msra.mxu0 %v324
    %348 = vmatmul.bf16.gmra.mxu0 %v288
    %v349 = vpop.f32.mrf.mxu0
    %v350 = vadd.f32 %v290, %v349
    %v351 = vpop.f32.mrf.mxu0
    %v352 = vadd.f32 %v290, %v351
    %353 = vdwg.mxu0
    %v354 = vsub.f32 0.0, %v350
    %v355 = vsub.f32 0.0, %v352
    %v356 = vmul.f32 %v354, 1.442695
    %v357 = vpow.pop %v356
    %v358 = vmul.f32 %v355, 1.442695
    %v359 = vpow.pop %v358
    %v360 = vadd.f32 %v357, 1.0
    %v361 = vadd.f32 %v359, 1.0
    %v362 = vrcp.pop %v360
    %v363 = vrcp.pop %v361
    %364 = vst [vmem:[#allocation10] sm:$0xff] %v362
    %365 = vst [vmem:[#allocation10 + $0x8] sm:$0xff] %v363
    // Predicated region
    $region46: #{tpu_custom_call.1} parent=1 // pred_check
      _
    $region47: #{tpu_custom_call.1} parent=1 // pred_check_branch
      %367 = sbr.rel (0) target = $region49
    $region48: #{tpu_custom_call.1} parent=1 // pred_region
      %369 = vsyncadd [#allocation4], 0
      %s370 = sshll.u32 [#allocation10], 4
      %s371 = int_to_ptr.vmem [resolvable:$true] %s370
      %s372 = sshll.u32 %s7, 4
      %s373 = int_to_ptr.hbm [resolvable:$true] %s372
      %378 = dma.vmem_to_hbm [thread:$0]  %s371, 256, %s373, [#allocation4], 128, 128, 8
    $region49: #{tpu_custom_call.1} parent=1 // pred_fallthru
      _
    // Predicated region
    $region50: #{tpu_custom_call.1} parent=1 // pred_check
      _
    $region51: #{tpu_custom_call.1} parent=1 // pred_check_branch
      %380 = sbr.rel (0) target = $region53
    $region52: #{tpu_custom_call.1} parent=1 // pred_region
      %382 = dma.done [#allocation4], 256
    $region53: #{tpu_custom_call.1} parent=1 // pred_fallthru
      _
    %383 = vsyncpa [#allocation3], 1
    %384 = vsyncpa [#allocation6], 1
    %385 = vsyncpa [#allocation9], 1
    %386 = vsyncpa [#allocation4], 1

</llo_original>
